<compile_context>
chip_gen: v6e
topology: v6e:2x2x1
jax: 0.10.0
libtpu: 0.0.40
codegen_flags: <defaults>
</compile_context>

<pallas_src>
import functools

import jax
import jax.numpy as jnp
from jax.experimental import pallas as pl
from jax.experimental.pallas import tpu as pltpu


def _cfm_kernel(x_ref, wf_ref, wi_ref, wb_ref, o_ref, acc_ref, *, inv_hw, inv_c):
    # x_ref : [B, C, T]   wf : [C, 2C]   wi : [2C, C]   wb : [2, 2C]
    # o_ref : [B, C]      acc_ref : [B, C] f32 scratch (spatial-sum accumulator)
    hw_id = pl.program_id(0)

    @pl.when(hw_id == 0)
    def _init():
        acc_ref[...] = jnp.zeros_like(acc_ref)

    # Partial spatial sum for this lane-dense HW tile (XLU cross-lane reduce).
    acc_ref[...] += jnp.sum(x_ref[...], axis=-1)

    @pl.when(hw_id == pl.num_programs(0) - 1)
    def _finalize():
        gap = acc_ref[...] * inv_hw                                    # [B, C]

        # Fused forward DFT: FRI = [FR | FI] = gap @ [ccos | -csin]   -> [B, 2C]
        fri = jnp.dot(gap, wf_ref[...], preferred_element_type=jnp.float32)

        # Depthwise Conv1d(k=1, groups=C) == per-channel affine, then ReLU.
        wb = wb_ref[...]
        cri = jnp.maximum(fri * wb[0:1, :] + wb[1:2, :], 0.0)          # [B, 2C]

        # real(IFFT): recon = (CR @ ccos - CI @ csin) / C = CRI @ [ccos ; -csin] / C
        recon = jnp.dot(cri, wi_ref[...], preferred_element_type=jnp.float32) * inv_c
        o_ref[...] = recon.astype(o_ref.dtype)


def _pick_tile(hw):
    # Lane-dense tiles (multiple of 128), prefer 512-2048 for HBM roofline;
    # fall back to the full spatial extent (single block) if nothing divides.
    for t in (2048, 1024, 512, 256, 128):
        if hw % t == 0:
            return t
    return hw


def channel_wise_fourier_modeling(x, dw_weight, dw_bias):
    """x: [B, C, H, W] float32; dw_weight/dw_bias: [C] (Conv1d k=1, groups=C)."""
    B, C, H, W = x.shape
    HW = H * W
    tile = _pick_tile(HW)
    n_tiles = HW // tile

    # Dense DFT matrices; angle built from (k*n mod C) to keep f32 precision.
    k = jnp.arange(C, dtype=jnp.int32)
    kn_mod = (k[:, None] * k[None, :]) % C
    angle = (2.0 * jnp.pi / C) * kn_mod.astype(jnp.float32)
    ccos = jnp.cos(angle)
    csin = jnp.sin(angle)
    wf = jnp.concatenate([ccos, -csin], axis=1)                        # [C, 2C]
    wi = jnp.concatenate([ccos, -csin], axis=0)                        # [2C, C]

    w2 = jnp.tile(dw_weight.reshape(1, C).astype(jnp.float32), (1, 2))  # [1, 2C]
    b2 = jnp.tile(dw_bias.reshape(1, C).astype(jnp.float32), (1, 2))    # [1, 2C]
    wb = jnp.concatenate([w2, b2], axis=0)                              # [2, 2C]

    x_flat = x.reshape(B, C, HW).astype(jnp.float32)

    kernel = functools.partial(_cfm_kernel, inv_hw=1.0 / HW, inv_c=1.0 / C)

    block_bytes = B * C * tile * 4
    vmem_limit = min(64 * 1024 * 1024,
                     max(4 * 1024 * 1024, 4 * block_bytes + (2 << 20)))
    cost = pl.CostEstimate(
        flops=2 * B * C * HW + 2 * (2 * B * (2 * C) * C),
        transcendentals=0,
        bytes_accessed=B * C * HW * 4 + B * C * 4
                       + (wf.size + wi.size + wb.size) * 4,
    )

    recon = pl.pallas_call(
        kernel,
        out_shape=jax.ShapeDtypeStruct((B, C), jnp.float32),
        grid=(n_tiles,),
        in_specs=[
            pl.BlockSpec((B, C, tile), lambda i: (0, 0, i)),
            pl.BlockSpec((C, 2 * C), lambda i: (0, 0)),
            pl.BlockSpec((2 * C, C), lambda i: (0, 0)),
            pl.BlockSpec((2, 2 * C), lambda i: (0, 0)),
        ],
        out_specs=pl.BlockSpec((B, C), lambda i: (0, 0)),
        scratch_shapes=[pltpu.VMEM((B, C), jnp.float32)],
        compiler_params=pltpu.CompilerParams(
            dimension_semantics=("arbitrary",),
            vmem_limit_bytes=vmem_limit,
        ),
        cost_estimate=cost,
    )(x_flat, wf, wi, wb)

    # Broadcast to [B, C, H, W] outside the kernel (fuses into the consumer;
    # avoids an extra full-size HBM write inside the pallas_call).
    return jnp.broadcast_to(recon[:, :, None, None], (B, C, H, W))


def _reference(x, w, b):
    gap = x.mean(axis=(2, 3))
    ft = jnp.fft.fft(gap.astype(jnp.complex64), axis=1)
    FR, FI = ft.real, ft.imag
    CR = jnp.maximum(FR * w[None, :] + b[None, :], 0.0)
    CI = jnp.maximum(FI * w[None, :] + b[None, :], 0.0)
    recon = jnp.fft.ifft(CR + 1j * CI, axis=1).real
    B, C, H, W = x.shape
    return jnp.broadcast_to(recon[:, :, None, None], (B, C, H, W)).astype(jnp.float32)


if __name__ == "__main__":
    key = jax.random.PRNGKey(0)
    kx, kw, kb, kx2 = jax.random.split(key, 4)

    # Deterministic synthetic Conv1d(k=1, groups=C) parameters.
    C = 4
    dw_weight = jax.random.normal(kw, (C,), dtype=jnp.float32)
    dw_bias = jax.random.normal(kb, (C,), dtype=jnp.float32) * 0.1

    # Test 1: small shape (single HW tile).
    B, H, W = 2, 16, 16
    x = jax.random.normal(kx, (B, C, H, W), dtype=jnp.float32)
    out = jax.block_until_ready(channel_wise_fourier_modeling(x, dw_weight, dw_bias))
    ref = _reference(x, dw_weight, dw_bias)
    assert out.shape == (B, C, H, W)
    assert jnp.allclose(out, ref, atol=1e-4, rtol=1e-4), float(jnp.max(jnp.abs(out - ref)))

    # Test 2: larger spatial extent -> multi-step reduction grid (2 tiles of 2048).
    B2, H2, W2 = 2, 64, 64
    x2 = jax.random.normal(kx2, (B2, C, H2, W2), dtype=jnp.float32)
    out2 = jax.block_until_ready(channel_wise_fourier_modeling(x2, dw_weight, dw_bias))
    ref2 = _reference(x2, dw_weight, dw_bias)
    assert out2.shape == (B2, C, H2, W2)
    assert jnp.allclose(out2, ref2, atol=1e-4, rtol=1e-4), float(jnp.max(jnp.abs(out2 - ref2)))

    print("KERNEL_OK")
</pallas_src>

<mosaic_0001>
module attributes {stable_mosaic.version = 11 : i64} {
  func.func @_cfm_kernel(%arg0: i32, %arg1: memref<2x4x256xf32, #tpu.memory_space<vmem>>, %arg2: memref<4x8xf32, #tpu.memory_space<vmem>>, %arg3: memref<8x4xf32, #tpu.memory_space<vmem>>, %arg4: memref<2x8xf32, #tpu.memory_space<vmem>>, %arg5: memref<2x4xf32, #tpu.memory_space<vmem>>, %arg6: memref<2x4xf32, #tpu.memory_space<vmem>>) attributes {dimension_semantics = [#tpu.dimension_semantics<arbitrary>], iteration_bounds = array<i64: 1>, scalar_prefetch = 0 : i64, scratch_operands = 1 : i64, tpu.core_type = #tpu.core_type<tc>, window_params = [{transform_indices = @transform_0, window_bounds = array<i64: 2, 4, 256>}, {pipeline_mode = #tpu.pipeline_mode<synchronous>, transform_indices = @transform_1, window_bounds = array<i64: 4, 8>}, {pipeline_mode = #tpu.pipeline_mode<synchronous>, transform_indices = @transform_2, window_bounds = array<i64: 8, 4>}, {pipeline_mode = #tpu.pipeline_mode<synchronous>, transform_indices = @transform_3, window_bounds = array<i64: 2, 8>}, {pipeline_mode = #tpu.pipeline_mode<synchronous>, transform_indices = @transform_4, window_bounds = array<i64: 2, 4>}]} {
    %c0_i32 = arith.constant 0 : i32
    %0 = arith.cmpi eq, %arg0, %c0_i32 : i32
    %1 = arith.extui %0 : i1 to i32
    %c0_i32_0 = arith.constant 0 : i32
    %2 = arith.cmpi ne, %1, %c0_i32_0 : i32
    scf.if %2 {
      %cst_9 = arith.constant 0.000000e+00 : f32
      %11 = vector.broadcast %cst_9 : f32 to vector<2x4xf32>
      %c0_10 = arith.constant 0 : index
      %c0_11 = arith.constant 0 : index
      %12 = vector.load %arg6[%c0_10, %c0_11] : memref<2x4xf32, #tpu.memory_space<vmem>>, vector<2x4xf32>
      tpu.vector_store %arg6[%c0_10, %c0_11], %11 {strides = array<i32>} : memref<2x4xf32, #tpu.memory_space<vmem>>, vector<2x4xf32>,
    } else {
    }
    %c0 = arith.constant 0 : index
    %c0_1 = arith.constant 0 : index
    %3 = vector.load %arg6[%c0, %c0_1] : memref<2x4xf32, #tpu.memory_space<vmem>>, vector<2x4xf32>
    %c0_2 = arith.constant 0 : index
    %c0_3 = arith.constant 0 : index
    %c0_4 = arith.constant 0 : index
    %4 = vector.load %arg1[%c0_2, %c0_3, %c0_4] : memref<2x4x256xf32, #tpu.memory_space<vmem>>, vector<2x4x256xf32>
    %cst = arith.constant dense<0.000000e+00> : vector<2x4xf32>
    %5 = vector.multi_reduction <add>, %4, %cst [2] : vector<2x4x256xf32> to vector<2x4xf32>
    %6 = arith.addf %3, %5 : vector<2x4xf32>
    %c0_5 = arith.constant 0 : index
    %c0_6 = arith.constant 0 : index
    %7 = vector.load %arg6[%c0_5, %c0_6] : memref<2x4xf32, #tpu.memory_space<vmem>>, vector<2x4xf32>
    tpu.vector_store %arg6[%c0_5, %c0_6], %6 {strides = array<i32>} : memref<2x4xf32, #tpu.memory_space<vmem>>, vector<2x4xf32>,
    %c0_i32_7 = arith.constant 0 : i32
    %8 = arith.cmpi eq, %arg0, %c0_i32_7 : i32
    %9 = arith.extui %8 : i1 to i32
    %c0_i32_8 = arith.constant 0 : i32
    %10 = arith.cmpi ne, %9, %c0_i32_8 : i32
    scf.if %10 {
      %c0_9 = arith.constant 0 : index
      %c0_10 = arith.constant 0 : index
      %11 = vector.load %arg6[%c0_9, %c0_10] : memref<2x4xf32, #tpu.memory_space<vmem>>, vector<2x4xf32>
      %cst_11 = arith.constant 3.906250e-03 : f32
      %12 = vector.broadcast %cst_11 : f32 to vector<2x4xf32>
      %13 = arith.mulf %11, %12 : vector<2x4xf32>
      %c0_12 = arith.constant 0 : index
      %c0_13 = arith.constant 0 : index
      %14 = vector.load %arg2[%c0_12, %c0_13] : memref<4x8xf32, #tpu.memory_space<vmem>>, vector<4x8xf32>
      %cst_14 = arith.constant dense<0.000000e+00> : vector<2x8xf32>
      %15 = tpu.matmul %13, %14, %cst_14 {dimension_numbers = #tpu.dot_dimension_numbers<[1], [0], [0], [1], [0, 0, 1, 1], [], []>} : vector<2x4xf32>, vector<4x8xf32>, vector<2x8xf32> -> vector<2x8xf32>
      %c0_15 = arith.constant 0 : index
      %c0_16 = arith.constant 0 : index
      %16 = vector.load %arg4[%c0_15, %c0_16] : memref<2x8xf32, #tpu.memory_space<vmem>>, vector<2x8xf32>
      %17 = vector.extract_strided_slice %16 {offsets = [0, 0], sizes = [1, 8], strides = [1, 1]} : vector<2x8xf32> to vector<1x8xf32>
      %18 = vector.broadcast %17 : vector<1x8xf32> to vector<2x8xf32>
      %19 = arith.mulf %15, %18 : vector<2x8xf32>
      %20 = vector.extract_strided_slice %16 {offsets = [1, 0], sizes = [1, 8], strides = [1, 1]} : vector<2x8xf32> to vector<1x8xf32>
      %21 = vector.broadcast %20 : vector<1x8xf32> to vector<2x8xf32>
      %22 = arith.addf %19, %21 : vector<2x8xf32>
      %cst_17 = arith.constant 0.000000e+00 : f32
      %23 = vector.broadcast %cst_17 : f32 to vector<2x8xf32>
      %24 = arith.maximumf %22, %23 : vector<2x8xf32>
      %c0_18 = arith.constant 0 : index
      %c0_19 = arith.constant 0 : index
      %25 = vector.load %arg3[%c0_18, %c0_19] : memref<8x4xf32, #tpu.memory_space<vmem>>, vector<8x4xf32>
      %cst_20 = arith.constant dense<0.000000e+00> : vector<2x4xf32>
      %26 = tpu.matmul %24, %25, %cst_20 {dimension_numbers = #tpu.dot_dimension_numbers<[1], [0], [0], [1], [0, 0, 1, 1], [], []>} : vector<2x8xf32>, vector<8x4xf32>, vector<2x4xf32> -> vector<2x4xf32>
      %cst_21 = arith.constant 2.500000e-01 : f32
      %27 = vector.broadcast %cst_21 : f32 to vector<2x4xf32>
      %28 = arith.mulf %26, %27 : vector<2x4xf32>
      %c0_22 = arith.constant 0 : index
      %c0_23 = arith.constant 0 : index
      %29 = vector.load %arg5[%c0_22, %c0_23] : memref<2x4xf32, #tpu.memory_space<vmem>>, vector<2x4xf32>
      tpu.vector_store %arg5[%c0_22, %c0_23], %28 {strides = array<i32>} : memref<2x4xf32, #tpu.memory_space<vmem>>, vector<2x4xf32>,
    } else {
    }
    return
  }
  func.func @transform_0(%arg0: i32) -> (i32, i32, i32) {
    %c0_i32 = arith.constant 0 : i32
    %c0_i32_0 = arith.constant 0 : i32
    %c0_i32_1 = arith.constant 0 : i32
    return %c0_i32, %c0_i32_0, %arg0 : i32, i32, i32
  }
  func.func @transform_1(%arg0: i32) -> (i32, i32) {
    %c0_i32 = arith.constant 0 : i32
    %c0_i32_0 = arith.constant 0 : i32
    %c0_i32_1 = arith.constant 0 : i32
    return %c0_i32, %c0_i32_0 : i32, i32
  }
  func.func @transform_2(%arg0: i32) -> (i32, i32) {
    %c0_i32 = arith.constant 0 : i32
    %c0_i32_0 = arith.constant 0 : i32
    %c0_i32_1 = arith.constant 0 : i32
    return %c0_i32, %c0_i32_0 : i32, i32
  }
  func.func @transform_3(%arg0: i32) -> (i32, i32) {
    %c0_i32 = arith.constant 0 : i32
    %c0_i32_0 = arith.constant 0 : i32
    %c0_i32_1 = arith.constant 0 : i32
    return %c0_i32, %c0_i32_0 : i32, i32
  }
  func.func @transform_4(%arg0: i32) -> (i32, i32) {
    %c0_i32 = arith.constant 0 : i32
    %c0_i32_0 = arith.constant 0 : i32
    %c0_i32_1 = arith.constant 0 : i32
    return %c0_i32, %c0_i32_0 : i32, i32
  }
}

</mosaic_0001>

<llo_original>
// kernel: tpu_custom_call.1
$region0: #{tpu_custom_call.1}
  #allocation0 [shape = 'u32[]', space=smem, size = 0x4, offset = 0x4, fixed_abs, tag = 'smem constant byte address 0x4 - core index']
  #allocation1 [shape = 'u32[144,128]{1,0:T(1,128)}', space=vmem, size = 0x12000, scoped, tag = 'internal scratch']
  #allocation2 [shape = 'f32[2,4]{1,0:T(2,128)}', space=vmem, size = 0x400, scoped, tag = 'scratch operand']
  %s0 = inlined_call_operand.hbm [shape: f32[2,4,256], index: 0, kind: input, shape index: {}]
  %s1 = inlined_call_operand.vmem [shape: f32[4,8], index: 1, kind: input, shape index: {}]
  %s2 = inlined_call_operand.vmem [shape: f32[8,4], index: 2, kind: input, shape index: {}]
  %s3 = inlined_call_operand.vmem [shape: f32[2,8], index: 3, kind: input, shape index: {}]
  %s4 = inlined_call_operand.hbm [shape: f32[2,4], index: 4, kind: output, shape index: {}]
  %s5 = sld [smem:[#allocation0]]
  $region38: #{tpu_custom_call.1} parent=0
    _
  %s7 = ssub.s32 1, %s5
  %s8 = scalar_select 0, %s7, %s5
  $region1: #{tpu_custom_call.1} parent=0
    #allocation3 [shape = 'u8[8192]{0}', space=vmem, size = 0x2000, scoped, tag = 'input window, operand 0, single buffered']
    #allocation4 [shape = 's32[1]{0}', space=sflag, size = 0x4, scoped, tag = 'scoped memory for tpu_custom_call.1']
    #allocation5 [shape = 's32[1]{0}', space=sflag, size = 0x4, scoped, tag = 'scoped memory for tpu_custom_call.1']
    #allocation6 [shape = 'u8[1024]{0}', space=vmem, size = 0x400, scoped, tag = 'output window, operand 0, single buffered']
    %9 = vsyncpa [#allocation4], 0
    %10 = vsyncpa [#allocation5], 0
    // Predicated region
    $region2: #{tpu_custom_call.1} parent=1 // pred_check
      _
    $region3: #{tpu_custom_call.1} parent=1 // pred_check_branch
      %12 = sbr.rel (0) target = $region5
    $region4: #{tpu_custom_call.1} parent=1 // pred_region
      %s14 = ssub.s32 256, 256
      %15 = vsyncadd [#allocation4], %s14
      %s16 = sshll.u32 [#allocation3], 4
      %s17 = int_to_ptr.vmem [resolvable:$true] %s16
      %22 = dma.hbm_to_vmem [thread:$0]  %s0, 256, %s17, [#allocation4], 128, 128, 8
    $region5: #{tpu_custom_call.1} parent=1 // pred_fallthru
      _
    // Predicated region
    $region6: #{tpu_custom_call.1} parent=1 // pred_check
      _
    $region7: #{tpu_custom_call.1} parent=1 // pred_check_branch
      %24 = sbr.rel (0) target = $region9
    $region8: #{tpu_custom_call.1} parent=1 // pred_region
      _
    $region9: #{tpu_custom_call.1} parent=1 // pred_fallthru
      _
    // Predicated region
    $region10: #{tpu_custom_call.1} parent=1 // pred_check
      _
    $region11: #{tpu_custom_call.1} parent=1 // pred_check_branch
      %26 = sbr.rel (0) target = $region13
    $region12: #{tpu_custom_call.1} parent=1 // pred_region
      _
    $region13: #{tpu_custom_call.1} parent=1 // pred_fallthru
      _
    // Predicated region
    $region14: #{tpu_custom_call.1} parent=1 // pred_check
      _
    $region15: #{tpu_custom_call.1} parent=1 // pred_check_branch
      %28 = sbr.rel (0) target = $region17
    $region16: #{tpu_custom_call.1} parent=1 // pred_region
      _
    $region17: #{tpu_custom_call.1} parent=1 // pred_fallthru
      _
    // Predicated region
    $region18: #{tpu_custom_call.1} parent=1 // pred_check
      _
    $region19: #{tpu_custom_call.1} parent=1 // pred_check_branch
      %30 = sbr.rel (0) target = $region21
    $region20: #{tpu_custom_call.1} parent=1 // pred_region
      %31 = dma.done [#allocation4], 256
    $region21: #{tpu_custom_call.1} parent=1 // pred_fallthru
      _
    %p32 = scmp.eq.s32.totalorder 0, 0
    // Predicated region
    $region22: #{tpu_custom_call.1} parent=1 // pred_check
      %p33 = pneg %p32
    $region23: #{tpu_custom_call.1} parent=1 // pred_check_branch
      %35 = sbr.rel (%p33) target = $region25
    $region24: #{tpu_custom_call.1} parent=1 // pred_region
      %vm36 = vcmask 25600
      %37 = vst.msk [vmem:[#allocation2] sm:$0x3] %vm36, 0.0
    $region25: #{tpu_custom_call.1} parent=1 // pred_fallthru
      _
    %v38 = vld [vmem:[#allocation2] sm:$0x3]
    %v39 = vld [vmem:[#allocation3] sm:$0xff]
    %v40 = vld [vmem:[#allocation3 + $0x8] sm:$0xff]
    %v43 = vcombine.high %v39, %v39
    %v44 = vcombine.high %v40, %v40
    %vm47 = vcmask 1043456
    %v48 = vsel %vm47, %v39, 0.0
    %v49 = vsel %vm47, %v43, 0.0
    %v50 = vadd.f32 %v48, %v49
    %51 = vadd.xlane.f32.xlu0 %v50
    %v52 = vpop.xlane.xlu0 %51
    %v53 = vsel %vm47, %v40, 0.0
    %v54 = vsel %vm47, %v44, 0.0
    %v55 = vadd.f32 %v53, %v54
    %56 = vadd.xlane.f32.xlu0 %v55
    %v57 = vpop.xlane.xlu0 %56
    %v60 = vlaneseq
    %v61 = vand.u32 %v60, 127
    %v62 = vlaneseq
    %v63 = vshrl.u32 %v62, 7
    %v64 = vsub.s32 %v61, %v63
    %v65 = vrot.slane %v52, %v64
    %v66 = vlaneseq
    %v67 = vshrl.u32 %v66, 7
    %v68 = vsub.s32 %v61, %v67
    %v69 = vrot.slane %v57, %v68
    %vm70 = vcmask 1041409
    %v71 = vsel %vm70, %v69, %v65
    %v73 = vadd.f32 %v38, %v71
    %vm74 = vcmask 25600
    %75 = vst.msk [vmem:[#allocation2] sm:$0x3] %vm74, %v73
    // Predicated region
    $region26: #{tpu_custom_call.1} parent=1 // pred_check
      %p76 = pneg %p32
    $region27: #{tpu_custom_call.1} parent=1 // pred_check_branch
      %78 = sbr.rel (%p76) target = $region29
    $region28: #{tpu_custom_call.1} parent=1 // pred_region
      %v79 = vld [vmem:[#allocation2] sm:$0x3]
      %v80 = vmul.f32 %v79, 0.00390625
      %v81 = vld [vmem:[%s1] sm:$0xf]
      %vm82 = vcmask 31744
      %v84 = vsel %vm82, %v80, 0
      %v87 = vsel %vm47, %v81, 0
      %89 = vmatprep.subr.mxu0 0.0
      %90 = vmatpush1.msra.mxu0 0.0
      %91 = vmatprep.subr.mxu0 0.0
      %92 = vmatpush1.msra.mxu0 0.0
      %93 = vmatprep.subr.mxu0 0.0
      %94 = vmatpush1.msra.mxu0 0.0
      %95 = vmatprep.subr.mxu0 0.0
      %96 = vmatpush1.msra.mxu0 0.0
      %97 = vmatprep.subr.mxu0 0.0
      %98 = vmatpush1.msra.mxu0 0.0
      %99 = vmatprep.subr.mxu0 0.0
      %100 = vmatpush1.msra.mxu0 0.0
      %101 = vmatprep.subr.mxu0 0.0
      %102 = vmatpush1.msra.mxu0 0.0
      %103 = vmatprep.subr.mxu0 0.0
      %104 = vmatpush1.msra.mxu0 0.0
      %105 = vmatprep.subr.mxu0 0.0
      %106 = vmatpush1.msra.mxu0 0.0
      %107 = vmatprep.subr.mxu0 0.0
      %108 = vmatpush1.msra.mxu0 0.0
      %109 = vmatprep.subr.mxu0 0.0
      %110 = vmatpush1.msra.mxu0 0.0
      %111 = vmatprep.subr.mxu0 0.0
      %112 = vmatpush1.msra.mxu0 0.0
      %113 = vmatprep.subr.mxu0 0.0
      %114 = vmatpush1.msra.mxu0 0.0
      %115 = vmatprep.subr.mxu0 0.0
      %116 = vmatpush1.msra.mxu0 0.0
      %117 = vmatprep.subr.mxu0 0.0
      %118 = vmatpush1.msra.mxu0 0.0
      %119 = vmatprep.subr.mxu0 0.0
      %120 = vmatpush1.msra.mxu0 %v87
      %121 = vmatprep.subr.mxu0 0.0
      %122 = vmatpush2.msra.mxu0 0.0
      %123 = vmatprep.subr.mxu0 0.0
      %124 = vmatpush2.msra.mxu0 0.0
      %125 = vmatprep.subr.mxu0 0.0
      %126 = vmatpush2.msra.mxu0 0.0
      %127 = vmatprep.subr.mxu0 0.0
      %128 = vmatpush2.msra.mxu0 0.0
      %129 = vmatprep.subr.mxu0 0.0
      %130 = vmatpush2.msra.mxu0 0.0
      %131 = vmatprep.subr.mxu0 0.0
      %132 = vmatpush2.msra.mxu0 0.0
      %133 = vmatprep.subr.mxu0 0.0
      %134 = vmatpush2.msra.mxu0 0.0
      %135 = vmatprep.subr.mxu0 0.0
      %136 = vmatpush2.msra.mxu0 0.0
      %137 = vmatprep.subr.mxu0 0.0
      %138 = vmatpush2.msra.mxu0 0.0
      %139 = vmatprep.subr.mxu0 0.0
      %140 = vmatpush2.msra.mxu0 0.0
      %141 = vmatprep.subr.mxu0 0.0
      %142 = vmatpush2.msra.mxu0 0.0
      %143 = vmatprep.subr.mxu0 0.0
      %144 = vmatpush2.msra.mxu0 0.0
      %145 = vmatprep.subr.mxu0 0.0
      %146 = vmatpush2.msra.mxu0 0.0
      %147 = vmatprep.subr.mxu0 0.0
      %148 = vmatpush2.msra.mxu0 0.0
      %149 = vmatprep.subr.mxu0 0.0
      %150 = vmatpush2.msra.mxu0 0.0
      %151 = vmatprep.subr.mxu0 0.0
      %152 = vmatpush2.msra.mxu0 0.0
      %153 = vmatprep.mubr.f32.mxu0 0.0
      %154 = vmatmul.mubr.f32.gmra.mxu0 %v84
      %v155 = vpop.f32.mrf.mxu0
      %v156 = vadd.f32 0.0, %v155
      %v157 = vpop.f32.mrf.mxu0
      %158 = vdwg.mxu0
      %v159 = vld [vmem:[%s3] sm:$0x3]
      %v160 = vlaneseq
      %v161 = vshrl.u32 %v160, 7
      %v162 = vsub.s32 0, %v161
      %v163 = vrot.slane %v159, %v162
      %v164 = vmul.f32 %v156, %v163
      %v165 = vlaneseq
      %v166 = vshrl.u32 %v165, 7
      %v167 = vsub.s32 1, %v166
      %v168 = vrot.slane %v159, %v167
      %v169 = vadd.f32 %v164, %v168
      %v170 = vmax.f32 %v169, 0.0
      %v171 = vld [vmem:[%s2] sm:$0xff]
      %vm172 = vcmask 64512
      %v174 = vsel %vm172, %v170, 0
      %176 = vmatprep.subr.mxu0 0.0
      %177 = vmatpush1.msra.mxu0 0.0
      %178 = vmatprep.subr.mxu0 0.0
      %179 = vmatpush1.msra.mxu0 0.0
      %180 = vmatprep.subr.mxu0 0.0
      %181 = vmatpush1.msra.mxu0 0.0
      %182 = vmatprep.subr.mxu0 0.0
      %183 = vmatpush1.msra.mxu0 0.0
      %184 = vmatprep.subr.mxu0 0.0
      %185 = vmatpush1.msra.mxu0 0.0
      %186 = vmatprep.subr.mxu0 0.0
      %187 = vmatpush1.msra.mxu0 0.0
      %188 = vmatprep.subr.mxu0 0.0
      %189 = vmatpush1.msra.mxu0 0.0
      %190 = vmatprep.subr.mxu0 0.0
      %191 = vmatpush1.msra.mxu0 0.0
      %192 = vmatprep.subr.mxu0 0.0
      %193 = vmatpush1.msra.mxu0 0.0
      %194 = vmatprep.subr.mxu0 0.0
      %195 = vmatpush1.msra.mxu0 0.0
      %196 = vmatprep.subr.mxu0 0.0
      %197 = vmatpush1.msra.mxu0 0.0
      %198 = vmatprep.subr.mxu0 0.0
      %199 = vmatpush1.msra.mxu0 0.0
      %200 = vmatprep.subr.mxu0 0.0
      %201 = vmatpush1.msra.mxu0 0.0
      %202 = vmatprep.subr.mxu0 0.0
      %203 = vmatpush1.msra.mxu0 0.0
      %204 = vmatprep.subr.mxu0 0.0
      %205 = vmatpush1.msra.mxu0 0.0
      %206 = vmatprep.subr.mxu0 0.0
      %207 = vmatpush1.msra.mxu0 %v171
      %208 = vmatprep.subr.mxu0 0.0
      %209 = vmatpush2.msra.mxu0 0.0
      %210 = vmatprep.subr.mxu0 0.0
      %211 = vmatpush2.msra.mxu0 0.0
      %212 = vmatprep.subr.mxu0 0.0
      %213 = vmatpush2.msra.mxu0 0.0
      %214 = vmatprep.subr.mxu0 0.0
      %215 = vmatpush2.msra.mxu0 0.0
      %216 = vmatprep.subr.mxu0 0.0
      %217 = vmatpush2.msra.mxu0 0.0
      %218 = vmatprep.subr.mxu0 0.0
      %219 = vmatpush2.msra.mxu0 0.0
      %220 = vmatprep.subr.mxu0 0.0
      %221 = vmatpush2.msra.mxu0 0.0
      %222 = vmatprep.subr.mxu0 0.0
      %223 = vmatpush2.msra.mxu0 0.0
      %224 = vmatprep.subr.mxu0 0.0
      %225 = vmatpush2.msra.mxu0 0.0
      %226 = vmatprep.subr.mxu0 0.0
      %227 = vmatpush2.msra.mxu0 0.0
      %228 = vmatprep.subr.mxu0 0.0
      %229 = vmatpush2.msra.mxu0 0.0
      %230 = vmatprep.subr.mxu0 0.0
      %231 = vmatpush2.msra.mxu0 0.0
      %232 = vmatprep.subr.mxu0 0.0
      %233 = vmatpush2.msra.mxu0 0.0
      %234 = vmatprep.subr.mxu0 0.0
      %235 = vmatpush2.msra.mxu0 0.0
      %236 = vmatprep.subr.mxu0 0.0
      %237 = vmatpush2.msra.mxu0 0.0
      %238 = vmatprep.subr.mxu0 0.0
      %239 = vmatpush2.msra.mxu0 0.0
      %240 = vmatprep.mubr.f32.mxu0 0.0
      %241 = vmatmul.mubr.f32.gmra.mxu0 %v174
      %v242 = vpop.f32.mrf.mxu0
      %v243 = vadd.f32 0.0, %v242
      %v244 = vpop.f32.mrf.mxu0
      %245 = vdwg.mxu0
      %v246 = vmul.f32 %v243, 0.25
      %247 = vst.msk [vmem:[#allocation6] sm:$0x3] %vm74, %v246
    $region29: #{tpu_custom_call.1} parent=1 // pred_fallthru
      _
    // Predicated region
    $region30: #{tpu_custom_call.1} parent=1 // pred_check
      _
    $region31: #{tpu_custom_call.1} parent=1 // pred_check_branch
      %249 = sbr.rel (0) target = $region33
    $region32: #{tpu_custom_call.1} parent=1 // pred_region
      %s251 = ssub.s32 32, 32
      %252 = vsyncadd [#allocation5], %s251
      %s254 = sshll.u32 [#allocation6], 4
      %s255 = int_to_ptr.vmem [resolvable:$true] %s254
      %257 = dma.vmem_to_hbm [thread:$0]  %s255, 32, %s4, [#allocation5]
    $region33: #{tpu_custom_call.1} parent=1 // pred_fallthru
      _
    // Predicated region
    $region34: #{tpu_custom_call.1} parent=1 // pred_check
      _
    $region35: #{tpu_custom_call.1} parent=1 // pred_check_branch
      %259 = sbr.rel (0) target = $region37
    $region36: #{tpu_custom_call.1} parent=1 // pred_region
      %260 = dma.done [#allocation5], 32
    $region37: #{tpu_custom_call.1} parent=1 // pred_fallthru
      _
    %261 = vsyncpa [#allocation4], 1
    %262 = vsyncpa [#allocation5], 1

</llo_original>
